<compile_context>
chip_gen: v7x
topology: tpu7x:2x2x1
jax: 0.10.0
libtpu: 0.0.40
codegen_flags: <defaults>
</compile_context>

<pallas_src>
import jax
import jax.numpy as jnp
from jax.experimental import pallas as pl
from jax.experimental.pallas import tpu as pltpu

EPS = 1e-5  # PyTorch BatchNorm2d default eps


# --------------------------------------------------------------------------
# Helpers (wrapper side)
# --------------------------------------------------------------------------
def _round_up(x, m):
    return ((x + m - 1) // m) * m


def _vmem_limit_bytes():
    """Generation-aware scoped-VMEM limit: half of physical VMEM, clamped."""
    try:
        cap = getattr(pltpu.get_tpu_info(), "vmem_capacity_bytes", 0) or 0
    except Exception:  # pragma: no cover - info query not available
        cap = 0
    if not cap:
        return 32 * 1024 * 1024
    return int(min(max(cap // 2, 32 * 1024 * 1024), 96 * 1024 * 1024))


def _choose_row_tile(N, HW, row_bytes, cap_bytes=2 << 20):
    """Row tile (flattened N*H*W rows) sized by bytes; always divides R.

    Prefers k whole images per tile (k | N) with k*HW*row_bytes <= ~2 MiB, so
    no padding/slicing is ever needed between stages.
    """
    R = N * HW
    per_image = HW * max(row_bytes, 1)
    best = None
    for k in range(1, N + 1):
        if N % k == 0 and (k * HW) % 8 == 0 and k * per_image <= cap_bytes:
            best = k * HW
    if best is not None:
        return best
    if HW % 8 == 0:
        return HW  # one image per tile: bounded VMEM even if above byte cap
    # TODO(synk): pad R in the wrapper for awkward H*W not divisible by 8.
    return R


def _bn_scale_shift(st_partials, C, count, gamma, beta):
    """Combine per-tile (sum, sumsq) slabs into per-channel scale/shift."""
    s = jnp.sum(st_partials.astype(jnp.float32), axis=0)   # (8, Cpad)
    mean = s[0, :C] / count
    var = jnp.maximum(s[1, :C] / count - mean * mean, 0.0)  # biased variance
    scale = gamma.astype(jnp.float32) * jax.lax.rsqrt(var + EPS)
    shift = beta.astype(jnp.float32) - mean * scale
    return scale.reshape(1, C), shift.reshape(1, C)


# --------------------------------------------------------------------------
# Kernels
# --------------------------------------------------------------------------
def _stats_slab(acc_f32, cpad):
    """Lane-dense (1, 8, cpad) slab: row0 = sum, row1 = sumsq, rest zeros."""
    c = acc_f32.shape[-1]
    s = jnp.sum(acc_f32, axis=0, keepdims=True)
    q = jnp.sum(acc_f32 * acc_f32, axis=0, keepdims=True)
    slab = jnp.concatenate([s, q, jnp.zeros((6, c), jnp.float32)], axis=0)
    if cpad > c:
        slab = jnp.concatenate(
            [slab, jnp.zeros((8, cpad - c), jnp.float32)], axis=1)
    return slab[None]


def _conv1_kernel(x_ref, w_ref, y_ref, st_ref):
    # conv1 (1x1): row-tile matmul + BN1 partial stats.
    acc = jnp.dot(x_ref[...], w_ref[...], preferred_element_type=jnp.float32)
    y_ref[...] = acc.astype(y_ref.dtype)
    st_ref[...] = _stats_slab(acc, st_ref.shape[-1])


def _bn_relu_conv3x3_kernel(y1_ref, w2_ref, s_ref, t_ref, y2_ref, st_ref,
                            pad_ref, win_ref):
    # One image per program: bn1 + relu, then 3x3 conv as ONE K=9P matmul.
    _, H, W, P = y1_ref.shape
    HW = H * W
    a = jnp.maximum(y1_ref[0].astype(jnp.float32) * s_ref[...] + t_ref[...],
                    0.0)
    # Zero-padded (H+2, W+2, P) scratch.  Re-zeroed every step so "parallel"
    # megacore sharding stays correct (each core's scratch keeps zero borders).
    pad_ref[...] = jnp.zeros_like(pad_ref)
    pad_ref[1:H + 1, 1:W + 1, :] = a.astype(pad_ref.dtype)
    # Build the (HW, 9P) window matrix from 9 static shifted slices of the
    # padded scratch (no roll / iota masks / lane concat).
    for t in range(9):
        ky, kx = t // 3, t % 3
        tap = pad_ref[ky:ky + H, kx:kx + W, :]
        win_ref[:, t * P:(t + 1) * P] = tap.reshape(HW, P)
    acc = jnp.dot(win_ref[...], w2_ref[...],
                  preferred_element_type=jnp.float32)
    y2_ref[...] = acc.reshape(1, H, W, P).astype(y2_ref.dtype)
    st_ref[...] = _stats_slab(acc, st_ref.shape[-1])


def _bn_relu_conv1x1_stats_kernel(y2_ref, w_ref, s_ref, t_ref, st_ref):
    # bn2 + relu + conv3 (1x1); emit only BN3 partial stats (y3 not stored).
    a = jnp.maximum(y2_ref[...].astype(jnp.float32) * s_ref[...] + t_ref[...],
                    0.0)
    acc = jnp.dot(a.astype(w_ref.dtype), w_ref[...],
                  preferred_element_type=jnp.float32)
    st_ref[...] = _stats_slab(acc, st_ref.shape[-1])


def _conv3_bn_add_relu_kernel(y2_ref, w_ref, s2_ref, t2_ref, s3_ref, t3_ref,
                              r_ref, o_ref):
    # Recompute conv3 (bn2+relu+1x1 matmul), then bn3 + residual + relu.
    a = jnp.maximum(y2_ref[...].astype(jnp.float32) * s2_ref[...] + t2_ref[...],
                    0.0)
    acc = jnp.dot(a.astype(w_ref.dtype), w_ref[...],
                  preferred_element_type=jnp.float32)
    y = acc * s3_ref[...] + t3_ref[...] + r_ref[...].astype(jnp.float32)
    o_ref[...] = jnp.maximum(y, 0.0).astype(o_ref.dtype)


# --------------------------------------------------------------------------
# Wrapper
# --------------------------------------------------------------------------
def bottleneck_forward(x_nchw, w1, w2, w3, g1, b1, g2, b2, g3, b3,
                       *, compute_dtype=jnp.bfloat16):
    N, Cin, H, W = x_nchw.shape
    P = w1.shape[1]
    Cout = w3.shape[1]
    assert Cout == Cin, "downsample is None => inplanes must equal 4*planes"
    assert w2.shape == (3, 3, P, P)

    cd = compute_dtype
    isz = jnp.dtype(cd).itemsize
    f32 = jnp.float32
    HW = H * W
    R = N * HW

    params = pltpu.CompilerParams(
        dimension_semantics=("parallel",),
        vmem_limit_bytes=_vmem_limit_bytes())

    # Hoisted layout work: NHWC activations, fused/flattened weights, casts.
    x_nhwc = jnp.transpose(x_nchw, (0, 2, 3, 1))
    x2d = x_nhwc.reshape(R, Cin).astype(cd)        # also the residual stream
    w1c = w1.astype(cd)                            # (Cin, P)
    w2f = w2.reshape(9 * P, P).astype(cd)          # fused 9-tap weight, K=9P
    w3c = w3.astype(cd)                            # (P, 4P)

    TR = _choose_row_tile(N, HW, max(Cin, Cout) * isz)
    T = R // TR

    cp1 = _round_up(P, 128)        # lane-dense stat width for bn1/bn2
    cp3 = _round_up(Cout, 128)     # lane-dense stat width for bn3

    # ---- stage 1: conv1 (1x1) + BN1 partial stats --------------------------
    y1, st1 = pl.pallas_call(
        _conv1_kernel,
        grid=(T,),
        out_shape=(jax.ShapeDtypeStruct((R, P), cd),
                   jax.ShapeDtypeStruct((T, 8, cp1), f32)),
        in_specs=[pl.BlockSpec((TR, Cin), lambda i: (i, 0)),
                  pl.BlockSpec((Cin, P), lambda i: (0, 0))],
        out_specs=(pl.BlockSpec((TR, P), lambda i: (i, 0)),
                   pl.BlockSpec((1, 8, cp1), lambda i: (i, 0, 0))),
        compiler_params=params,
        cost_estimate=pl.CostEstimate(
            flops=2 * R * Cin * P, transcendentals=0,
            bytes_accessed=(R * Cin + R * P + Cin * P) * isz
                           + T * 8 * cp1 * 4),
    )(x2d, w1c)
    scale1, shift1 = _bn_scale_shift(st1, P, R, g1, b1)

    # ---- stage 2: bn1 + relu + conv2 (3x3, one K=9P matmul) + BN2 stats ----
    y2, st2 = pl.pallas_call(
        _bn_relu_conv3x3_kernel,
        grid=(N,),
        out_shape=(jax.ShapeDtypeStruct((N, H, W, P), cd),
                   jax.ShapeDtypeStruct((N, 8, cp1), f32)),
        in_specs=[pl.BlockSpec((1, H, W, P), lambda n: (n, 0, 0, 0)),
                  pl.BlockSpec((9 * P, P), lambda n: (0, 0)),
                  pl.BlockSpec((1, P), lambda n: (0, 0)),
                  pl.BlockSpec((1, P), lambda n: (0, 0))],
        out_specs=(pl.BlockSpec((1, H, W, P), lambda n: (n, 0, 0, 0)),
                   pl.BlockSpec((1, 8, cp1), lambda n: (n, 0, 0))),
        scratch_shapes=[pltpu.VMEM((H + 2, W + 2, P), cd),   # padded act
                        pltpu.VMEM((HW, 9 * P), cd)],        # window matrix
        compiler_params=params,
        cost_estimate=pl.CostEstimate(
            flops=2 * R * 9 * P * P, transcendentals=0,
            bytes_accessed=2 * R * P * isz + 9 * P * P * isz
                           + N * 8 * cp1 * 4),
    )(y1.reshape(N, H, W, P), w2f, scale1, shift1)
    scale2, shift2 = _bn_scale_shift(st2, P, R, g2, b2)

    y2f = y2.reshape(R, P)

    # ---- stage 3: bn2 + relu + conv3 (1x1) -> BN3 partial stats ONLY -------
    st3 = pl.pallas_call(
        _bn_relu_conv1x1_stats_kernel,
        grid=(T,),
        out_shape=jax.ShapeDtypeStruct((T, 8, cp3), f32),
        in_specs=[pl.BlockSpec((TR, P), lambda i: (i, 0)),
                  pl.BlockSpec((P, Cout), lambda i: (0, 0)),
                  pl.BlockSpec((1, P), lambda i: (0, 0)),
                  pl.BlockSpec((1, P), lambda i: (0, 0))],
        out_specs=pl.BlockSpec((1, 8, cp3), lambda i: (i, 0, 0)),
        compiler_params=params,
        cost_estimate=pl.CostEstimate(
            flops=2 * R * P * Cout, transcendentals=0,
            bytes_accessed=(R * P + P * Cout) * isz + T * 8 * cp3 * 4),
    )(y2f, w3c, scale2, shift2)
    scale3, shift3 = _bn_scale_shift(st3, Cout, R, g3, b3)

    # ---- stage 4: recompute conv3, then bn3 + residual add + relu ----------
    out2d = pl.pallas_call(
        _conv3_bn_add_relu_kernel,
        grid=(T,),
        out_shape=jax.ShapeDtypeStruct((R, Cout), cd),
        in_specs=[pl.BlockSpec((TR, P), lambda i: (i, 0)),
                  pl.BlockSpec((P, Cout), lambda i: (0, 0)),
                  pl.BlockSpec((1, P), lambda i: (0, 0)),
                  pl.BlockSpec((1, P), lambda i: (0, 0)),
                  pl.BlockSpec((1, Cout), lambda i: (0, 0)),
                  pl.BlockSpec((1, Cout), lambda i: (0, 0)),
                  pl.BlockSpec((TR, Cout), lambda i: (i, 0))],
        out_specs=pl.BlockSpec((TR, Cout), lambda i: (i, 0)),
        compiler_params=params,
        cost_estimate=pl.CostEstimate(
            flops=2 * R * P * Cout + 3 * R * Cout, transcendentals=0,
            bytes_accessed=(R * P + 2 * R * Cout + P * Cout) * isz),
    )(y2f, w3c, scale2, shift2, scale3, shift3, x2d)

    out_nhwc = out2d.reshape(N, H, W, Cout)
    # Transpose in the (narrow) compute dtype, then upcast to f32.
    return jnp.transpose(out_nhwc, (0, 3, 1, 2)).astype(jnp.float32)


# --------------------------------------------------------------------------
# Pure-JAX (XLA) reference, mirrors the PyTorch forward (training-mode BN).
# --------------------------------------------------------------------------
def bottleneck_reference(x, w1, w2, w3, g1, b1, g2, b2, g3, b3):
    def bn(y, g, b):
        mean = jnp.mean(y, axis=(0, 2, 3), keepdims=True)
        var = jnp.mean((y - mean) ** 2, axis=(0, 2, 3), keepdims=True)
        return ((y - mean) * jax.lax.rsqrt(var + EPS)
                * g.reshape(1, -1, 1, 1) + b.reshape(1, -1, 1, 1))

    def conv(y, w_oihw, pad):
        return jax.lax.conv_general_dilated(
            y, w_oihw, window_strides=(1, 1), padding=pad,
            dimension_numbers=("NCHW", "OIHW", "NCHW"),
            precision=jax.lax.Precision.HIGHEST)

    w1_oihw = jnp.transpose(w1, (1, 0))[:, :, None, None]
    w2_oihw = jnp.transpose(w2, (3, 2, 0, 1))
    w3_oihw = jnp.transpose(w3, (1, 0))[:, :, None, None]

    out = jax.nn.relu(bn(conv(x, w1_oihw, "VALID"), g1, b1))
    out = jax.nn.relu(bn(conv(out, w2_oihw, ((1, 1), (1, 1))), g2, b2))
    out = bn(conv(out, w3_oihw, "VALID"), g3, b3)
    return jax.nn.relu(out + x)


if __name__ == "__main__":
    # inplanes = 4 * planes so the identity residual (downsample=None) is valid.
    N, H, W = 2, 16, 16
    inplanes, planes = 32, 8
    Cout = planes * 4  # == inplanes

    key = jax.random.PRNGKey(0)
    ks = jax.random.split(key, 10)
    x = jax.random.normal(ks[0], (N, inplanes, H, W), jnp.float32)
    w1 = 0.1 * jax.random.normal(ks[1], (inplanes, planes), jnp.float32)
    w2 = 0.1 * jax.random.normal(ks[2], (3, 3, planes, planes), jnp.float32)
    w3 = 0.1 * jax.random.normal(ks[3], (planes, Cout), jnp.float32)
    g1 = 1.0 + 0.1 * jax.random.normal(ks[4], (planes,), jnp.float32)
    b1 = 0.1 * jax.random.normal(ks[5], (planes,), jnp.float32)
    g2 = 1.0 + 0.1 * jax.random.normal(ks[6], (planes,), jnp.float32)
    b2 = 0.1 * jax.random.normal(ks[7], (planes,), jnp.float32)
    g3 = 1.0 + 0.1 * jax.random.normal(ks[8], (Cout,), jnp.float32)
    b3 = 0.1 * jax.random.normal(ks[9], (Cout,), jnp.float32)

    args = (x, w1, w2, w3, g1, b1, g2, b2, g3, b3)
    ref = jax.block_until_ready(bottleneck_reference(*args))

    # f32 compute path: tight numerical check against the XLA reference.
    out_f32 = jax.block_until_ready(
        bottleneck_forward(*args, compute_dtype=jnp.float32))
    assert out_f32.shape == (N, inplanes, H, W)
    err_f32 = float(jnp.max(jnp.abs(out_f32 - ref)))
    assert err_f32 < 1e-3, f"f32 mismatch vs reference: max |err| = {err_f32}"

    # bf16 compute path (MXU fast path on v6e/v7x): looser tolerance.
    out_bf16 = jax.block_until_ready(
        bottleneck_forward(*args, compute_dtype=jnp.bfloat16))
    assert out_bf16.shape == (N, inplanes, H, W)
    err_bf16 = float(jnp.max(jnp.abs(out_bf16 - ref)))
    assert err_bf16 < 1e-1, f"bf16 mismatch vs reference: max |err| = {err_bf16}"

    print("KERNEL_OK")
</pallas_src>

<mosaic_0001>
module attributes {stable_mosaic.version = 11 : i64} {
  func.func @_conv1_kernel(%arg0: i32, %arg1: memref<512x32xf32, #tpu.memory_space<vmem>>, %arg2: memref<32x8xf32, #tpu.memory_space<vmem>>, %arg3: memref<512x8xf32, #tpu.memory_space<vmem>>, %arg4: memref<1x8x128xf32, #tpu.memory_space<vmem>>) attributes {dimension_semantics = [#tpu.dimension_semantics<parallel>], iteration_bounds = array<i64: 1>, scalar_prefetch = 0 : i64, scratch_operands = 0 : i64, tpu.core_type = #tpu.core_type<tc>, window_params = [{transform_indices = @transform_0, window_bounds = array<i64: 512, 32>}, {pipeline_mode = #tpu.pipeline_mode<synchronous>, transform_indices = @transform_1, window_bounds = array<i64: 32, 8>}, {transform_indices = @transform_2, window_bounds = array<i64: 512, 8>}, {transform_indices = @transform_3, window_bounds = array<i64: 1, 8, 128>}]} {
    %c0 = arith.constant 0 : index
    %c0_0 = arith.constant 0 : index
    %0 = vector.load %arg1[%c0, %c0_0] : memref<512x32xf32, #tpu.memory_space<vmem>>, vector<512x32xf32>
    %c0_1 = arith.constant 0 : index
    %c0_2 = arith.constant 0 : index
    %1 = vector.load %arg2[%c0_1, %c0_2] : memref<32x8xf32, #tpu.memory_space<vmem>>, vector<32x8xf32>
    %cst = arith.constant dense<0.000000e+00> : vector<512x8xf32>
    %2 = tpu.matmul %0, %1, %cst {dimension_numbers = #tpu.dot_dimension_numbers<[1], [0], [0], [1], [0, 0, 1, 1], [], []>} : vector<512x32xf32>, vector<32x8xf32>, vector<512x8xf32> -> vector<512x8xf32>
    %c0_3 = arith.constant 0 : index
    %c0_4 = arith.constant 0 : index
    %3 = vector.load %arg3[%c0_3, %c0_4] : memref<512x8xf32, #tpu.memory_space<vmem>>, vector<512x8xf32>
    tpu.vector_store %arg3[%c0_3, %c0_4], %2 {strides = array<i32>} : memref<512x8xf32, #tpu.memory_space<vmem>>, vector<512x8xf32>,
    %cst_5 = arith.constant dense<0.000000e+00> : vector<8xf32>
    %4 = vector.multi_reduction <add>, %2, %cst_5 [0] : vector<512x8xf32> to vector<8xf32>
    %5 = vector.shape_cast %4 : vector<8xf32> to vector<1x8xf32>
    %6 = arith.mulf %2, %2 : vector<512x8xf32>
    %cst_6 = arith.constant dense<0.000000e+00> : vector<8xf32>
    %7 = vector.multi_reduction <add>, %6, %cst_6 [0] : vector<512x8xf32> to vector<8xf32>
    %8 = vector.shape_cast %7 : vector<8xf32> to vector<1x8xf32>
    %cst_7 = arith.constant 0.000000e+00 : f32
    %9 = vector.broadcast %cst_7 : f32 to vector<6x8xf32>
    %10 = tpu.concatenate %5, %8, %9 in 0 : vector<1x8xf32>, vector<1x8xf32>, vector<6x8xf32> -> vector<8x8xf32>
    %cst_8 = arith.constant 0.000000e+00 : f32
    %11 = vector.broadcast %cst_8 : f32 to vector<8x120xf32>
    %12 = tpu.concatenate %10, %11 in 1 : vector<8x8xf32>, vector<8x120xf32> -> vector<8x128xf32>
    %13 = vector.shape_cast %12 : vector<8x128xf32> to vector<1x8x128xf32>
    %c0_9 = arith.constant 0 : index
    %c0_10 = arith.constant 0 : index
    %c0_11 = arith.constant 0 : index
    %14 = vector.load %arg4[%c0_9, %c0_10, %c0_11] : memref<1x8x128xf32, #tpu.memory_space<vmem>>, vector<1x8x128xf32>
    tpu.vector_store %arg4[%c0_9, %c0_10, %c0_11], %13 {strides = array<i32>} : memref<1x8x128xf32, #tpu.memory_space<vmem>>, vector<1x8x128xf32>,
    return
  }
  func.func @transform_0(%arg0: i32) -> (i32, i32) {
    %c0_i32 = arith.constant 0 : i32
    %c0_i32_0 = arith.constant 0 : i32
    return %arg0, %c0_i32 : i32, i32
  }
  func.func @transform_1(%arg0: i32) -> (i32, i32) {
    %c0_i32 = arith.constant 0 : i32
    %c0_i32_0 = arith.constant 0 : i32
    %c0_i32_1 = arith.constant 0 : i32
    return %c0_i32, %c0_i32_0 : i32, i32
  }
  func.func @transform_2(%arg0: i32) -> (i32, i32) {
    %c0_i32 = arith.constant 0 : i32
    %c0_i32_0 = arith.constant 0 : i32
    return %arg0, %c0_i32 : i32, i32
  }
  func.func @transform_3(%arg0: i32) -> (i32, i32, i32) {
    %c0_i32 = arith.constant 0 : i32
    %c0_i32_0 = arith.constant 0 : i32
    %c0_i32_1 = arith.constant 0 : i32
    return %arg0, %c0_i32, %c0_i32_0 : i32, i32, i32
  }
}

</mosaic_0001>

<llo_original>
// kernel: tpu_custom_call.1
$region0: #{tpu_custom_call.1}
  #allocation0 [shape = 'u32[]', space=smem, size = 0x4, offset = 0x4, fixed_abs, tag = 'smem constant byte address 0x4 - core index']
  #allocation1 [shape = 'u32[144,128]{1,0:T(1,128)}', space=vmem, size = 0x12000, scoped, tag = 'internal scratch']
  %s0 = inlined_call_operand.vmem [shape: f32[512,32], index: 0, kind: input, shape index: {}]
  %s1 = inlined_call_operand.vmem [shape: f32[32,8], index: 1, kind: input, shape index: {}]
  %s2 = inlined_call_operand.vmem [shape: f32[512,8], index: 2, kind: output, shape index: {0}]
  %s3 = inlined_call_operand.hbm [shape: f32[1,8,128], index: 3, kind: output, shape index: {1}]
  %4 = xla_tuple %s2, %s3
  %s5 = sld [smem:[#allocation0]]
  $region26: #{tpu_custom_call.1} parent=0
    _
  %s7 = ssub.s32 1, %s5
  %s8 = scalar_select 0, %s7, %s5
  $region1: #{tpu_custom_call.1} parent=0
    #allocation2 [shape = 'u8[4096]{0}', space=vmem, size = 0x1000, scoped, tag = 'output window, operand 1, single buffered']
    #allocation3 [shape = 's32[1]{0}', space=sflag, size = 0x4, scoped, tag = 'scoped memory for tpu_custom_call.1']
    %9 = vsyncpa [#allocation3], 0
    // Predicated region
    $region2: #{tpu_custom_call.1} parent=1 // pred_check
      _
    $region3: #{tpu_custom_call.1} parent=1 // pred_check_branch
      %11 = sbr.rel (0) target = $region5
    $region4: #{tpu_custom_call.1} parent=1 // pred_region
      _
    $region5: #{tpu_custom_call.1} parent=1 // pred_fallthru
      _
    // Predicated region
    $region6: #{tpu_custom_call.1} parent=1 // pred_check
      _
    $region7: #{tpu_custom_call.1} parent=1 // pred_check_branch
      %13 = sbr.rel (0) target = $region9
    $region8: #{tpu_custom_call.1} parent=1 // pred_region
      _
    $region9: #{tpu_custom_call.1} parent=1 // pred_fallthru
      _
    %v14 = vld [vmem:[%s0] sm:$0xff]
    %v15 = vld [vmem:[%s0 + $0x8] sm:$0xff]
    %v16 = vld [vmem:[%s0 + $0x10] sm:$0xff]
    %v17 = vld [vmem:[%s0 + $0x18] sm:$0xff]
    %v18 = vld [vmem:[%s0 + $0x20] sm:$0xff]
    %v19 = vld [vmem:[%s0 + $0x28] sm:$0xff]
    %v20 = vld [vmem:[%s0 + $0x30] sm:$0xff]
    %v21 = vld [vmem:[%s0 + $0x38] sm:$0xff]
    %v22 = vld [vmem:[%s0 + $0x40] sm:$0xff]
    %v23 = vld [vmem:[%s0 + $0x48] sm:$0xff]
    %v24 = vld [vmem:[%s0 + $0x50] sm:$0xff]
    %v25 = vld [vmem:[%s0 + $0x58] sm:$0xff]
    %v26 = vld [vmem:[%s0 + $0x60] sm:$0xff]
    %v27 = vld [vmem:[%s0 + $0x68] sm:$0xff]
    %v28 = vld [vmem:[%s0 + $0x70] sm:$0xff]
    %v29 = vld [vmem:[%s0 + $0x78] sm:$0xff]
    %v30 = vld [vmem:[%s0 + $0x80] sm:$0xff]
    %v31 = vld [vmem:[%s0 + $0x88] sm:$0xff]
    %v32 = vld [vmem:[%s0 + $0x90] sm:$0xff]
    %v33 = vld [vmem:[%s0 + $0x98] sm:$0xff]
    %v34 = vld [vmem:[%s0 + $0xa0] sm:$0xff]
    %v35 = vld [vmem:[%s0 + $0xa8] sm:$0xff]
    %v36 = vld [vmem:[%s0 + $0xb0] sm:$0xff]
    %v37 = vld [vmem:[%s0 + $0xb8] sm:$0xff]
    %v38 = vld [vmem:[%s0 + $0xc0] sm:$0xff]
    %v39 = vld [vmem:[%s0 + $0xc8] sm:$0xff]
    %v40 = vld [vmem:[%s0 + $0xd0] sm:$0xff]
    %v41 = vld [vmem:[%s0 + $0xd8] sm:$0xff]
    %v42 = vld [vmem:[%s0 + $0xe0] sm:$0xff]
    %v43 = vld [vmem:[%s0 + $0xe8] sm:$0xff]
    %v44 = vld [vmem:[%s0 + $0xf0] sm:$0xff]
    %v45 = vld [vmem:[%s0 + $0xf8] sm:$0xff]
    %v46 = vld [vmem:[%s0 + $0x100] sm:$0xff]
    %v47 = vld [vmem:[%s0 + $0x108] sm:$0xff]
    %v48 = vld [vmem:[%s0 + $0x110] sm:$0xff]
    %v49 = vld [vmem:[%s0 + $0x118] sm:$0xff]
    %v50 = vld [vmem:[%s0 + $0x120] sm:$0xff]
    %v51 = vld [vmem:[%s0 + $0x128] sm:$0xff]
    %v52 = vld [vmem:[%s0 + $0x130] sm:$0xff]
    %v53 = vld [vmem:[%s0 + $0x138] sm:$0xff]
    %v54 = vld [vmem:[%s0 + $0x140] sm:$0xff]
    %v55 = vld [vmem:[%s0 + $0x148] sm:$0xff]
    %v56 = vld [vmem:[%s0 + $0x150] sm:$0xff]
    %v57 = vld [vmem:[%s0 + $0x158] sm:$0xff]
    %v58 = vld [vmem:[%s0 + $0x160] sm:$0xff]
    %v59 = vld [vmem:[%s0 + $0x168] sm:$0xff]
    %v60 = vld [vmem:[%s0 + $0x170] sm:$0xff]
    %v61 = vld [vmem:[%s0 + $0x178] sm:$0xff]
    %v62 = vld [vmem:[%s0 + $0x180] sm:$0xff]
    %v63 = vld [vmem:[%s0 + $0x188] sm:$0xff]
    %v64 = vld [vmem:[%s0 + $0x190] sm:$0xff]
    %v65 = vld [vmem:[%s0 + $0x198] sm:$0xff]
    %v66 = vld [vmem:[%s0 + $0x1a0] sm:$0xff]
    %v67 = vld [vmem:[%s0 + $0x1a8] sm:$0xff]
    %v68 = vld [vmem:[%s0 + $0x1b0] sm:$0xff]
    %v69 = vld [vmem:[%s0 + $0x1b8] sm:$0xff]
    %v70 = vld [vmem:[%s0 + $0x1c0] sm:$0xff]
    %v71 = vld [vmem:[%s0 + $0x1c8] sm:$0xff]
    %v72 = vld [vmem:[%s0 + $0x1d0] sm:$0xff]
    %v73 = vld [vmem:[%s0 + $0x1d8] sm:$0xff]
    %v74 = vld [vmem:[%s0 + $0x1e0] sm:$0xff]
    %v75 = vld [vmem:[%s0 + $0x1e8] sm:$0xff]
    %v76 = vld [vmem:[%s0 + $0x1f0] sm:$0xff]
    %v77 = vld [vmem:[%s0 + $0x1f8] sm:$0xff]
    %v78 = vld [vmem:[%s1] sm:$0xff]
    %v79 = vld [vmem:[%s1 + $0x8] sm:$0xff]
    %v80 = vld [vmem:[%s1 + $0x10] sm:$0xff]
    %v81 = vld [vmem:[%s1 + $0x18] sm:$0xff]
    %vm82 = vcmask 261120
    %v84 = vsel %vm82, %v14, 0
    %v87 = vsel %vm82, %v15, 0
    %v90 = vsel %vm82, %v16, 0
    %v93 = vsel %vm82, %v17, 0
    %v96 = vsel %vm82, %v18, 0
    %v99 = vsel %vm82, %v19, 0
    %v102 = vsel %vm82, %v20, 0
    %v105 = vsel %vm82, %v21, 0
    %v108 = vsel %vm82, %v22, 0
    %v111 = vsel %vm82, %v23, 0
    %v114 = vsel %vm82, %v24, 0
    %v117 = vsel %vm82, %v25, 0
    %v120 = vsel %vm82, %v26, 0
    %v123 = vsel %vm82, %v27, 0
    %v126 = vsel %vm82, %v28, 0
    %v129 = vsel %vm82, %v29, 0
    %v132 = vsel %vm82, %v30, 0
    %v135 = vsel %vm82, %v31, 0
    %v138 = vsel %vm82, %v32, 0
    %v141 = vsel %vm82, %v33, 0
    %v144 = vsel %vm82, %v34, 0
    %v147 = vsel %vm82, %v35, 0
    %v150 = vsel %vm82, %v36, 0
    %v153 = vsel %vm82, %v37, 0
    %v156 = vsel %vm82, %v38, 0
    %v159 = vsel %vm82, %v39, 0
    %v162 = vsel %vm82, %v40, 0
    %v165 = vsel %vm82, %v41, 0
    %v168 = vsel %vm82, %v42, 0
    %v171 = vsel %vm82, %v43, 0
    %v174 = vsel %vm82, %v44, 0
    %v177 = vsel %vm82, %v45, 0
    %v180 = vsel %vm82, %v46, 0
    %v183 = vsel %vm82, %v47, 0
    %v186 = vsel %vm82, %v48, 0
    %v189 = vsel %vm82, %v49, 0
    %v192 = vsel %vm82, %v50, 0
    %v195 = vsel %vm82, %v51, 0
    %v198 = vsel %vm82, %v52, 0
    %v201 = vsel %vm82, %v53, 0
    %v204 = vsel %vm82, %v54, 0
    %v207 = vsel %vm82, %v55, 0
    %v210 = vsel %vm82, %v56, 0
    %v213 = vsel %vm82, %v57, 0
    %v216 = vsel %vm82, %v58, 0
    %v219 = vsel %vm82, %v59, 0
    %v222 = vsel %vm82, %v60, 0
    %v225 = vsel %vm82, %v61, 0
    %v228 = vsel %vm82, %v62, 0
    %v231 = vsel %vm82, %v63, 0
    %v234 = vsel %vm82, %v64, 0
    %v237 = vsel %vm82, %v65, 0
    %v240 = vsel %vm82, %v66, 0
    %v243 = vsel %vm82, %v67, 0
    %v246 = vsel %vm82, %v68, 0
    %v249 = vsel %vm82, %v69, 0
    %v252 = vsel %vm82, %v70, 0
    %v255 = vsel %vm82, %v71, 0
    %v258 = vsel %vm82, %v72, 0
    %v261 = vsel %vm82, %v73, 0
    %v264 = vsel %vm82, %v74, 0
    %v267 = vsel %vm82, %v75, 0
    %v270 = vsel %vm82, %v76, 0
    %v273 = vsel %vm82, %v77, 0
    %275 = vmatprep.subr.mxu0 0.0
    %276 = vmatpush1.msra.mxu0 %v78
    %277 = vmatprep.subr.mxu0 0.0
    %278 = vmatpush1.msra.mxu0 %v79
    %279 = vmatprep.subr.mxu0 0.0
    %280 = vmatpush1.msra.mxu0 %v80
    %281 = vmatprep.subr.mxu0 0.0
    %282 = vmatpush1.msra.mxu0 %v81
    %283 = vmatprep.subr.mxu0 0.0
    %284 = vmatpush1.msra.mxu0 0.0
    %285 = vmatprep.subr.mxu0 0.0
    %286 = vmatpush1.msra.mxu0 0.0
    %287 = vmatprep.subr.mxu0 0.0
    %288 = vmatpush1.msra.mxu0 0.0
    %289 = vmatprep.subr.mxu0 0.0
    %290 = vmatpush1.msra.mxu0 0.0
    %291 = vmatprep.subr.mxu0 0.0
    %292 = vmatpush1.msra.mxu0 0.0
    %293 = vmatprep.subr.mxu0 0.0
    %294 = vmatpush1.msra.mxu0 0.0
    %295 = vmatprep.subr.mxu0 0.0
    %296 = vmatpush1.msra.mxu0 0.0
    %297 = vmatprep.subr.mxu0 0.0
    %298 = vmatpush1.msra.mxu0 0.0
    %299 = vmatprep.subr.mxu0 0.0
    %300 = vmatpush1.msra.mxu0 0.0
    %301 = vmatprep.subr.mxu0 0.0
    %302 = vmatpush1.msra.mxu0 0.0
    %303 = vmatprep.subr.mxu0 0.0
    %304 = vmatpush1.msra.mxu0 0.0
    %305 = vmatprep.subr.mxu0 0.0
    %306 = vmatpush1.msra.mxu0 0.0
    %307 = vmatprep.subr.mxu0 0.0
    %308 = vmatpush1.msra.mxu0 0.0
    %309 = vmatprep.subr.mxu0 0.0
    %310 = vmatpush1.msra.mxu0 0.0
    %311 = vmatprep.subr.mxu0 0.0
    %312 = vmatpush1.msra.mxu0 0.0
    %313 = vmatprep.subr.mxu0 0.0
    %314 = vmatpush1.msra.mxu0 0.0
    %315 = vmatprep.subr.mxu0 0.0
    %316 = vmatpush1.msra.mxu0 0.0
    %317 = vmatprep.subr.mxu0 0.0
    %318 = vmatpush1.msra.mxu0 0.0
    %319 = vmatprep.subr.mxu0 0.0
    %320 = vmatpush1.msra.mxu0 0.0
    %321 = vmatprep.subr.mxu0 0.0
    %322 = vmatpush1.msra.mxu0 0.0
    %323 = vmatprep.subr.mxu0 0.0
    %324 = vmatpush1.msra.mxu0 0.0
    %325 = vmatprep.subr.mxu0 0.0
    %326 = vmatpush1.msra.mxu0 0.0
    %327 = vmatprep.subr.mxu0 0.0
    %328 = vmatpush1.msra.mxu0 0.0
    %329 = vmatprep.subr.mxu0 0.0
    %330 = vmatpush1.msra.mxu0 0.0
    %331 = vmatprep.subr.mxu0 0.0
    %332 = vmatpush1.msra.mxu0 0.0
    %333 = vmatprep.subr.mxu0 0.0
    %334 = vmatpush1.msra.mxu0 0.0
    %335 = vmatprep.subr.mxu0 0.0
    %336 = vmatpush1.msra.mxu0 0.0
    %337 = vmatprep.subr.mxu0 0.0
    %338 = vmatpush1.msra.mxu0 0.0
    %339 = vmatprep.mubr.f32.mxu0 0.0
    %340 = vmatmul.mubr.f32.gmra.mrb[0].mxu0 %v84
    %v341 = vpop.f32.mrb[0].mxu0
    %v342 = vadd.f32 0.0, %v341
    %v343 = vpop.f32.mrb[0].mxu0
    %344 = vmatprep.mubr.f32.mxu0 0.0
    %345 = vmatmul.mubr.f32.gmra.mrb[0].mxu0 %v87
    %v346 = vpop.f32.mrb[0].mxu0
    %v347 = vadd.f32 0.0, %v346
    %v348 = vpop.f32.mrb[0].mxu0
    %349 = vmatprep.mubr.f32.mxu0 0.0
    %350 = vmatmul.mubr.f32.gmra.mrb[0].mxu0 %v90
    %v351 = vpop.f32.mrb[0].mxu0
    %v352 = vadd.f32 0.0, %v351
    %v353 = vpop.f32.mrb[0].mxu0
    %354 = vmatprep.mubr.f32.mxu0 0.0
    %355 = vmatmul.mubr.f32.gmra.mrb[0].mxu0 %v93
    %v356 = vpop.f32.mrb[0].mxu0
    %v357 = vadd.f32 0.0, %v356
    %v358 = vpop.f32.mrb[0].mxu0
    %359 = vmatprep.mubr.f32.mxu0 0.0
    %360 = vmatmul.mubr.f32.gmra.mrb[0].mxu0 %v96
    %v361 = vpop.f32.mrb[0].mxu0
    %v362 = vadd.f32 0.0, %v361
    %v363 = vpop.f32.mrb[0].mxu0
    %364 = vmatprep.mubr.f32.mxu0 0.0
    %365 = vmatmul.mubr.f32.gmra.mrb[0].mxu0 %v99
    %v366 = vpop.f32.mrb[0].mxu0
    %v367 = vadd.f32 0.0, %v366
    %v368 = vpop.f32.mrb[0].mxu0
    %369 = vmatprep.mubr.f32.mxu0 0.0
    %370 = vmatmul.mubr.f32.gmra.mrb[0].mxu0 %v102
    %v371 = vpop.f32.mrb[0].mxu0
    %v372 = vadd.f32 0.0, %v371
    %v373 = vpop.f32.mrb[0].mxu0
    %374 = vmatprep.mubr.f32.mxu0 0.0
    %375 = vmatmul.mubr.f32.gmra.mrb[0].mxu0 %v105
    %v376 = vpop.f32.mrb[0].mxu0
    %v377 = vadd.f32 0.0, %v376
    %v378 = vpop.f32.mrb[0].mxu0
    %379 = vmatprep.mubr.f32.mxu0 0.0
    %380 = vmatmul.mubr.f32.gmra.mrb[0].mxu0 %v108
    %v381 = vpop.f32.mrb[0].mxu0
    %v382 = vadd.f32 0.0, %v381
    %v383 = vpop.f32.mrb[0].mxu0
    %384 = vmatprep.mubr.f32.mxu0 0.0
    %385 = vmatmul.mubr.f32.gmra.mrb[0].mxu0 %v111
    %v386 = vpop.f32.mrb[0].mxu0
    %v387 = vadd.f32 0.0, %v386
    %v388 = vpop.f32.mrb[0].mxu0
    %389 = vmatprep.mubr.f32.mxu0 0.0
    %390 = vmatmul.mubr.f32.gmra.mrb[0].mxu0 %v114
    %v391 = vpop.f32.mrb[0].mxu0
    %v392 = vadd.f32 0.0, %v391
    %v393 = vpop.f32.mrb[0].mxu0
    %394 = vmatprep.mubr.f32.mxu0 0.0
    %395 = vmatmul.mubr.f32.gmra.mrb[0].mxu0 %v117
    %v396 = vpop.f32.mrb[0].mxu0
    %v397 = vadd.f32 0.0, %v396
    %v398 = vpop.f32.mrb[0].mxu0
    %399 = vmatprep.mubr.f32.mxu0 0.0
    %400 = vmatmul.mubr.f32.gmra.mrb[0].mxu0 %v120
    %v401 = vpop.f32.mrb[0].mxu0
    %v402 = vadd.f32 0.0, %v401
    %v403 = vpop.f32.mrb[0].mxu0
    %404 = vmatprep.mubr.f32.mxu0 0.0
    %405 = vmatmul.mubr.f32.gmra.mrb[0].mxu0 %v123
    %v406 = vpop.f32.mrb[0].mxu0
    %v407 = vadd.f32 0.0, %v406
    %v408 = vpop.f32.mrb[0].mxu0
    %409 = vmatprep.mubr.f32.mxu0 0.0
    %410 = vmatmul.mubr.f32.gmra.mrb[0].mxu0 %v126
    %v411 = vpop.f32.mrb[0].mxu0
    %v412 = vadd.f32 0.0, %v411
    %v413 = vpop.f32.mrb[0].mxu0
    %414 = vmatprep.mubr.f32.mxu0 0.0
    %415 = vmatmul.mubr.f32.gmra.mrb[0].mxu0 %v129
    %v416 = vpop.f32.mrb[0].mxu0
    %v417 = vadd.f32 0.0, %v416
    %v418 = vpop.f32.mrb[0].mxu0
    %419 = vmatprep.mubr.f32.mxu0 0.0
    %420 = vmatmul.mubr.f32.gmra.mrb[0].mxu0 %v132
    %v421 = vpop.f32.mrb[0].mxu0
    %v422 = vadd.f32 0.0, %v421
    %v423 = vpop.f32.mrb[0].mxu0
    %424 = vmatprep.mubr.f32.mxu0 0.0
    %425 = vmatmul.mubr.f32.gmra.mrb[0].mxu0 %v135
    %v426 = vpop.f32.mrb[0].mxu0
    %v427 = vadd.f32 0.0, %v426
    %v428 = vpop.f32.mrb[0].mxu0
    %429 = vmatprep.mubr.f32.mxu0 0.0
    %430 = vmatmul.mubr.f32.gmra.mrb[0].mxu0 %v138
    %v431 = vpop.f32.mrb[0].mxu0
    %v432 = vadd.f32 0.0, %v431
    %v433 = vpop.f32.mrb[0].mxu0
    %434 = vmatprep.mubr.f32.mxu0 0.0
    %435 = vmatmul.mubr.f32.gmra.mrb[0].mxu0 %v141
    %v436 = vpop.f32.mrb[0].mxu0
    %v437 = vadd.f32 0.0, %v436
    %v438 = vpop.f32.mrb[0].mxu0
    %439 = vmatprep.mubr.f32.mxu0 0.0
    %440 = vmatmul.mubr.f32.gmra.mrb[0].mxu0 %v144
    %v441 = vpop.f32.mrb[0].mxu0
    %v442 = vadd.f32 0.0, %v441
    %v443 = vpop.f32.mrb[0].mxu0
    %444 = vmatprep.mubr.f32.mxu0 0.0
    %445 = vmatmul.mubr.f32.gmra.mrb[0].mxu0 %v147
    %v446 = vpop.f32.mrb[0].mxu0
    %v447 = vadd.f32 0.0, %v446
    %v448 = vpop.f32.mrb[0].mxu0
    %449 = vmatprep.mubr.f32.mxu0 0.0
    %450 = vmatmul.mubr.f32.gmra.mrb[0].mxu0 %v150
    %v451 = vpop.f32.mrb[0].mxu0
    %v452 = vadd.f32 0.0, %v451
    %v453 = vpop.f32.mrb[0].mxu0
    %454 = vmatprep.mubr.f32.mxu0 0.0
    %455 = vmatmul.mubr.f32.gmra.mrb[0].mxu0 %v153
    %v456 = vpop.f32.mrb[0].mxu0
    %v457 = vadd.f32 0.0, %v456
    %v458 = vpop.f32.mrb[0].mxu0
    %459 = vmatprep.mubr.f32.mxu0 0.0
    %460 = vmatmul.mubr.f32.gmra.mrb[0].mxu0 %v156
    %v461 = vpop.f32.mrb[0].mxu0
    %v462 = vadd.f32 0.0, %v461
    %v463 = vpop.f32.mrb[0].mxu0
    %464 = vmatprep.mubr.f32.mxu0 0.0
    %465 = vmatmul.mubr.f32.gmra.mrb[0].mxu0 %v159
    %v466 = vpop.f32.mrb[0].mxu0
    %v467 = vadd.f32 0.0, %v466
    %v468 = vpop.f32.mrb[0].mxu0
    %469 = vmatprep.mubr.f32.mxu0 0.0
    %470 = vmatmul.mubr.f32.gmra.mrb[0].mxu0 %v162
    %v471 = vpop.f32.mrb[0].mxu0
    %v472 = vadd.f32 0.0, %v471
    %v473 = vpop.f32.mrb[0].mxu0
    %474 = vmatprep.mubr.f32.mxu0 0.0
    %475 = vmatmul.mubr.f32.gmra.mrb[0].mxu0 %v165
    %v476 = vpop.f32.mrb[0].mxu0
    %v477 = vadd.f32 0.0, %v476
    %v478 = vpop.f32.mrb[0].mxu0
    %479 = vmatprep.mubr.f32.mxu0 0.0
    %480 = vmatmul.mubr.f32.gmra.mrb[0].mxu0 %v168
    %v481 = vpop.f32.mrb[0].mxu0
    %v482 = vadd.f32 0.0, %v481
    %v483 = vpop.f32.mrb[0].mxu0
    %484 = vmatprep.mubr.f32.mxu0 0.0
    %485 = vmatmul.mubr.f32.gmra.mrb[0].mxu0 %v171
    %v486 = vpop.f32.mrb[0].mxu0
    %v487 = vadd.f32 0.0, %v486
    %v488 = vpop.f32.mrb[0].mxu0
    %489 = vmatprep.mubr.f32.mxu0 0.0
    %490 = vmatmul.mubr.f32.gmra.mrb[0].mxu0 %v174
    %v491 = vpop.f32.mrb[0].mxu0
    %v492 = vadd.f32 0.0, %v491
    %v493 = vpop.f32.mrb[0].mxu0
    %494 = vmatprep.mubr.f32.mxu0 0.0
    %495 = vmatmul.mubr.f32.gmra.mrb[0].mxu0 %v177
    %v496 = vpop.f32.mrb[0].mxu0
    %v497 = vadd.f32 0.0, %v496
    %v498 = vpop.f32.mrb[0].mxu0
    %499 = vmatprep.mubr.f32.mxu0 0.0
    %500 = vmatmul.mubr.f32.gmra.mrb[0].mxu0 %v180
    %v501 = vpop.f32.mrb[0].mxu0
    %v502 = vadd.f32 0.0, %v501
    %v503 = vpop.f32.mrb[0].mxu0
    %504 = vmatprep.mubr.f32.mxu0 0.0
    %505 = vmatmul.mubr.f32.gmra.mrb[0].mxu0 %v183
    %v506 = vpop.f32.mrb[0].mxu0
    %v507 = vadd.f32 0.0, %v506
    %v508 = vpop.f32.mrb[0].mxu0
    %509 = vmatprep.mubr.f32.mxu0 0.0
    %510 = vmatmul.mubr.f32.gmra.mrb[0].mxu0 %v186
    %v511 = vpop.f32.mrb[0].mxu0
    %v512 = vadd.f32 0.0, %v511
    %v513 = vpop.f32.mrb[0].mxu0
    %514 = vmatprep.mubr.f32.mxu0 0.0
    %515 = vmatmul.mubr.f32.gmra.mrb[0].mxu0 %v189
    %v516 = vpop.f32.mrb[0].mxu0
    %v517 = vadd.f32 0.0, %v516
    %v518 = vpop.f32.mrb[0].mxu0
    %519 = vmatprep.mubr.f32.mxu0 0.0
    %520 = vmatmul.mubr.f32.gmra.mrb[0].mxu0 %v192
    %v521 = vpop.f32.mrb[0].mxu0
    %v522 = vadd.f32 0.0, %v521
    %v523 = vpop.f32.mrb[0].mxu0
    %524 = vmatprep.mubr.f32.mxu0 0.0
    %525 = vmatmul.mubr.f32.gmra.mrb[0].mxu0 %v195
    %v526 = vpop.f32.mrb[0].mxu0
    %v527 = vadd.f32 0.0, %v526
    %v528 = vpop.f32.mrb[0].mxu0
    %529 = vmatprep.mubr.f32.mxu0 0.0
    %530 = vmatmul.mubr.f32.gmra.mrb[0].mxu0 %v198
    %v531 = vpop.f32.mrb[0].mxu0
    %v532 = vadd.f32 0.0, %v531
    %v533 = vpop.f32.mrb[0].mxu0
    %534 = vmatprep.mubr.f32.mxu0 0.0
    %535 = vmatmul.mubr.f32.gmra.mrb[0].mxu0 %v201
    %v536 = vpop.f32.mrb[0].mxu0
    %v537 = vadd.f32 0.0, %v536
    %v538 = vpop.f32.mrb[0].mxu0
    %539 = vmatprep.mubr.f32.mxu0 0.0
    %540 = vmatmul.mubr.f32.gmra.mrb[0].mxu0 %v204
    %v541 = vpop.f32.mrb[0].mxu0
    %v542 = vadd.f32 0.0, %v541
    %v543 = vpop.f32.mrb[0].mxu0
    %544 = vmatprep.mubr.f32.mxu0 0.0
    %545 = vmatmul.mubr.f32.gmra.mrb[0].mxu0 %v207
    %v546 = vpop.f32.mrb[0].mxu0
    %v547 = vadd.f32 0.0, %v546
    %v548 = vpop.f32.mrb[0].mxu0
    %549 = vmatprep.mubr.f32.mxu0 0.0
    %550 = vmatmul.mubr.f32.gmra.mrb[0].mxu0 %v210
    %v551 = vpop.f32.mrb[0].mxu0
    %v552 = vadd.f32 0.0, %v551
    %v553 = vpop.f32.mrb[0].mxu0
    %554 = vmatprep.mubr.f32.mxu0 0.0
    %555 = vmatmul.mubr.f32.gmra.mrb[0].mxu0 %v213
    %v556 = vpop.f32.mrb[0].mxu0
    %v557 = vadd.f32 0.0, %v556
    %v558 = vpop.f32.mrb[0].mxu0
    %559 = vmatprep.mubr.f32.mxu0 0.0
    %560 = vmatmul.mubr.f32.gmra.mrb[0].mxu0 %v216
    %v561 = vpop.f32.mrb[0].mxu0
    %v562 = vadd.f32 0.0, %v561
    %v563 = vpop.f32.mrb[0].mxu0
    %564 = vmatprep.mubr.f32.mxu0 0.0
    %565 = vmatmul.mubr.f32.gmra.mrb[0].mxu0 %v219
    %v566 = vpop.f32.mrb[0].mxu0
    %v567 = vadd.f32 0.0, %v566
    %v568 = vpop.f32.mrb[0].mxu0
    %569 = vmatprep.mubr.f32.mxu0 0.0
    %570 = vmatmul.mubr.f32.gmra.mrb[0].mxu0 %v222
    %v571 = vpop.f32.mrb[0].mxu0
    %v572 = vadd.f32 0.0, %v571
    %v573 = vpop.f32.mrb[0].mxu0
    %574 = vmatprep.mubr.f32.mxu0 0.0
    %575 = vmatmul.mubr.f32.gmra.mrb[0].mxu0 %v225
    %v576 = vpop.f32.mrb[0].mxu0
    %v577 = vadd.f32 0.0, %v576
    %v578 = vpop.f32.mrb[0].mxu0
    %579 = vmatprep.mubr.f32.mxu0 0.0
    %580 = vmatmul.mubr.f32.gmra.mrb[0].mxu0 %v228
    %v581 = vpop.f32.mrb[0].mxu0
    %v582 = vadd.f32 0.0, %v581
    %v583 = vpop.f32.mrb[0].mxu0
    %584 = vmatprep.mubr.f32.mxu0 0.0
    %585 = vmatmul.mubr.f32.gmra.mrb[0].mxu0 %v231
    %v586 = vpop.f32.mrb[0].mxu0
    %v587 = vadd.f32 0.0, %v586
    %v588 = vpop.f32.mrb[0].mxu0
    %589 = vmatprep.mubr.f32.mxu0 0.0
    %590 = vmatmul.mubr.f32.gmra.mrb[0].mxu0 %v234
    %v591 = vpop.f32.mrb[0].mxu0
    %v592 = vadd.f32 0.0, %v591
    %v593 = vpop.f32.mrb[0].mxu0
    %594 = vmatprep.mubr.f32.mxu0 0.0
    %595 = vmatmul.mubr.f32.gmra.mrb[0].mxu0 %v237
    %v596 = vpop.f32.mrb[0].mxu0
    %v597 = vadd.f32 0.0, %v596
    %v598 = vpop.f32.mrb[0].mxu0
    %599 = vmatprep.mubr.f32.mxu0 0.0
    %600 = vmatmul.mubr.f32.gmra.mrb[0].mxu0 %v240
    %v601 = vpop.f32.mrb[0].mxu0
    %v602 = vadd.f32 0.0, %v601
    %v603 = vpop.f32.mrb[0].mxu0
    %604 = vmatprep.mubr.f32.mxu0 0.0
    %605 = vmatmul.mubr.f32.gmra.mrb[0].mxu0 %v243
    %v606 = vpop.f32.mrb[0].mxu0
    %v607 = vadd.f32 0.0, %v606
    %v608 = vpop.f32.mrb[0].mxu0
    %609 = vmatprep.mubr.f32.mxu0 0.0
    %610 = vmatmul.mubr.f32.gmra.mrb[0].mxu0 %v246
    %v611 = vpop.f32.mrb[0].mxu0
    %v612 = vadd.f32 0.0, %v611
    %v613 = vpop.f32.mrb[0].mxu0
    %614 = vmatprep.mubr.f32.mxu0 0.0
    %615 = vmatmul.mubr.f32.gmra.mrb[0].mxu0 %v249
    %v616 = vpop.f32.mrb[0].mxu0
    %v617 = vadd.f32 0.0, %v616
    %v618 = vpop.f32.mrb[0].mxu0
    %619 = vmatprep.mubr.f32.mxu0 0.0
    %620 = vmatmul.mubr.f32.gmra.mrb[0].mxu0 %v252
    %v621 = vpop.f32.mrb[0].mxu0
    %v622 = vadd.f32 0.0, %v621
    %v623 = vpop.f32.mrb[0].mxu0
    %624 = vmatprep.mubr.f32.mxu0 0.0
    %625 = vmatmul.mubr.f32.gmra.mrb[0].mxu0 %v255
    %v626 = vpop.f32.mrb[0].mxu0
    %v627 = vadd.f32 0.0, %v626
    %v628 = vpop.f32.mrb[0].mxu0
    %629 = vmatprep.mubr.f32.mxu0 0.0
    %630 = vmatmul.mubr.f32.gmra.mrb[0].mxu0 %v258
    %v631 = vpop.f32.mrb[0].mxu0
    %v632 = vadd.f32 0.0, %v631
    %v633 = vpop.f32.mrb[0].mxu0
    %634 = vmatprep.mubr.f32.mxu0 0.0
    %635 = vmatmul.mubr.f32.gmra.mrb[0].mxu0 %v261
    %v636 = vpop.f32.mrb[0].mxu0
    %v637 = vadd.f32 0.0, %v636
    %v638 = vpop.f32.mrb[0].mxu0
    %639 = vmatprep.mubr.f32.mxu0 0.0
    %640 = vmatmul.mubr.f32.gmra.mrb[0].mxu0 %v264
    %v641 = vpop.f32.mrb[0].mxu0
    %v642 = vadd.f32 0.0, %v641
    %v643 = vpop.f32.mrb[0].mxu0
    %644 = vmatprep.mubr.f32.mxu0 0.0
    %645 = vmatmul.mubr.f32.gmra.mrb[0].mxu0 %v267
    %v646 = vpop.f32.mrb[0].mxu0
    %v647 = vadd.f32 0.0, %v646
    %v648 = vpop.f32.mrb[0].mxu0
    %649 = vmatprep.mubr.f32.mxu0 0.0
    %650 = vmatmul.mubr.f32.gmra.mrb[0].mxu0 %v270
    %v651 = vpop.f32.mrb[0].mxu0
    %v652 = vadd.f32 0.0, %v651
    %v653 = vpop.f32.mrb[0].mxu0
    %654 = vmatprep.mubr.f32.mxu0 0.0
    %655 = vmatmul.mubr.f32.gmra.mrb[0].mxu0 %v273
    %v656 = vpop.f32.mrb[0].mxu0
    %v657 = vadd.f32 0.0, %v656
    %v658 = vpop.f32.mrb[0].mxu0
    %659 = vdwg.mxu0
    %vm660 = vcmask 64512
    %661 = vst.msk [vmem:[%s2] sm:$0xff] %vm660, %v342
    %662 = vst.msk [vmem:[%s2 + $0x8] sm:$0xff] %vm660, %v347
    %663 = vst.msk [vmem:[%s2 + $0x10] sm:$0xff] %vm660, %v352
    %664 = vst.msk [vmem:[%s2 + $0x18] sm:$0xff] %vm660, %v357
    %665 = vst.msk [vmem:[%s2 + $0x20] sm:$0xff] %vm660, %v362
    %666 = vst.msk [vmem:[%s2 + $0x28] sm:$0xff] %vm660, %v367
    %667 = vst.msk [vmem:[%s2 + $0x30] sm:$0xff] %vm660, %v372
    %668 = vst.msk [vmem:[%s2 + $0x38] sm:$0xff] %vm660, %v377
    %669 = vst.msk [vmem:[%s2 + $0x40] sm:$0xff] %vm660, %v382
    %670 = vst.msk [vmem:[%s2 + $0x48] sm:$0xff] %vm660, %v387
    %671 = vst.msk [vmem:[%s2 + $0x50] sm:$0xff] %vm660, %v392
    %672 = vst.msk [vmem:[%s2 + $0x58] sm:$0xff] %vm660, %v397
    %673 = vst.msk [vmem:[%s2 + $0x60] sm:$0xff] %vm660, %v402
    %674 = vst.msk [vmem:[%s2 + $0x68] sm:$0xff] %vm660, %v407
    %675 = vst.msk [vmem:[%s2 + $0x70] sm:$0xff] %vm660, %v412
    %676 = vst.msk [vmem:[%s2 + $0x78] sm:$0xff] %vm660, %v417
    %677 = vst.msk [vmem:[%s2 + $0x80] sm:$0xff] %vm660, %v422
    %678 = vst.msk [vmem:[%s2 + $0x88] sm:$0xff] %vm660, %v427
    %679 = vst.msk [vmem:[%s2 + $0x90] sm:$0xff] %vm660, %v432
    %680 = vst.msk [vmem:[%s2 + $0x98] sm:$0xff] %vm660, %v437
    %681 = vst.msk [vmem:[%s2 + $0xa0] sm:$0xff] %vm660, %v442
    %682 = vst.msk [vmem:[%s2 + $0xa8] sm:$0xff] %vm660, %v447
    %683 = vst.msk [vmem:[%s2 + $0xb0] sm:$0xff] %vm660, %v452
    %684 = vst.msk [vmem:[%s2 + $0xb8] sm:$0xff] %vm660, %v457
    %685 = vst.msk [vmem:[%s2 + $0xc0] sm:$0xff] %vm660, %v462
    %686 = vst.msk [vmem:[%s2 + $0xc8] sm:$0xff] %vm660, %v467
    %687 = vst.msk [vmem:[%s2 + $0xd0] sm:$0xff] %vm660, %v472
    %688 = vst.msk [vmem:[%s2 + $0xd8] sm:$0xff] %vm660, %v477
    %689 = vst.msk [vmem:[%s2 + $0xe0] sm:$0xff] %vm660, %v482
    %690 = vst.msk [vmem:[%s2 + $0xe8] sm:$0xff] %vm660, %v487
    %691 = vst.msk [vmem:[%s2 + $0xf0] sm:$0xff] %vm660, %v492
    %692 = vst.msk [vmem:[%s2 + $0xf8] sm:$0xff] %vm660, %v497
    %693 = vst.msk [vmem:[%s2 + $0x100] sm:$0xff] %vm660, %v502
    %694 = vst.msk [vmem:[%s2 + $0x108] sm:$0xff] %vm660, %v507
    %695 = vst.msk [vmem:[%s2 + $0x110] sm:$0xff] %vm660, %v512
    %696 = vst.msk [vmem:[%s2 + $0x118] sm:$0xff] %vm660, %v517
    %697 = vst.msk [vmem:[%s2 + $0x120] sm:$0xff] %vm660, %v522
    %698 = vst.msk [vmem:[%s2 + $0x128] sm:$0xff] %vm660, %v527
    %699 = vst.msk [vmem:[%s2 + $0x130] sm:$0xff] %vm660, %v532
    %700 = vst.msk [vmem:[%s2 + $0x138] sm:$0xff] %vm660, %v537
    %701 = vst.msk [vmem:[%s2 + $0x140] sm:$0xff] %vm660, %v542
    %702 = vst.msk [vmem:[%s2 + $0x148] sm:$0xff] %vm660, %v547
    %703 = vst.msk [vmem:[%s2 + $0x150] sm:$0xff] %vm660, %v552
    %704 = vst.msk [vmem:[%s2 + $0x158] sm:$0xff] %vm660, %v557
    %705 = vst.msk [vmem:[%s2 + $0x160] sm:$0xff] %vm660, %v562
    %706 = vst.msk [vmem:[%s2 + $0x168] sm:$0xff] %vm660, %v567
    %707 = vst.msk [vmem:[%s2 + $0x170] sm:$0xff] %vm660, %v572
    %708 = vst.msk [vmem:[%s2 + $0x178] sm:$0xff] %vm660, %v577
    %709 = vst.msk [vmem:[%s2 + $0x180] sm:$0xff] %vm660, %v582
    %710 = vst.msk [vmem:[%s2 + $0x188] sm:$0xff] %vm660, %v587
    %711 = vst.msk [vmem:[%s2 + $0x190] sm:$0xff] %vm660, %v592
    %712 = vst.msk [vmem:[%s2 + $0x198] sm:$0xff] %vm660, %v597
    %713 = vst.msk [vmem:[%s2 + $0x1a0] sm:$0xff] %vm660, %v602
    %714 = vst.msk [vmem:[%s2 + $0x1a8] sm:$0xff] %vm660, %v607
    %715 = vst.msk [vmem:[%s2 + $0x1b0] sm:$0xff] %vm660, %v612
    %716 = vst.msk [vmem:[%s2 + $0x1b8] sm:$0xff] %vm660, %v617
    %717 = vst.msk [vmem:[%s2 + $0x1c0] sm:$0xff] %vm660, %v622
    %718 = vst.msk [vmem:[%s2 + $0x1c8] sm:$0xff] %vm660, %v627
    %719 = vst.msk [vmem:[%s2 + $0x1d0] sm:$0xff] %vm660, %v632
    %720 = vst.msk [vmem:[%s2 + $0x1d8] sm:$0xff] %vm660, %v637
    %721 = vst.msk [vmem:[%s2 + $0x1e0] sm:$0xff] %vm660, %v642
    %722 = vst.msk [vmem:[%s2 + $0x1e8] sm:$0xff] %vm660, %v647
    %723 = vst.msk [vmem:[%s2 + $0x1f0] sm:$0xff] %vm660, %v652
    %724 = vst.msk [vmem:[%s2 + $0x1f8] sm:$0xff] %vm660, %v657
    %v725 = vsel %vm660, %v342, 0.0
    %v726 = vsel %vm660, %v347, 0.0
    %v727 = vadd.f32 %v725, %v726
    %v728 = vsel %vm660, %v352, 0.0
    %v729 = vadd.f32 %v727, %v728
    %v730 = vsel %vm660, %v357, 0.0
    %v731 = vadd.f32 %v729, %v730
    %v732 = vsel %vm660, %v362, 0.0
    %v733 = vadd.f32 %v731, %v732
    %v734 = vsel %vm660, %v367, 0.0
    %v735 = vadd.f32 %v733, %v734
    %v736 = vsel %vm660, %v372, 0.0
    %v737 = vadd.f32 %v735, %v736
    %v738 = vsel %vm660, %v377, 0.0
    %v739 = vadd.f32 %v737, %v738
    %v740 = vsel %vm660, %v382, 0.0
    %v741 = vadd.f32 %v739, %v740
    %v742 = vsel %vm660, %v387, 0.0
    %v743 = vadd.f32 %v741, %v742
    %v744 = vsel %vm660, %v392, 0.0
    %v745 = vadd.f32 %v743, %v744
    %v746 = vsel %vm660, %v397, 0.0
    %v747 = vadd.f32 %v745, %v746
    %v748 = vsel %vm660, %v402, 0.0
    %v749 = vadd.f32 %v747, %v748
    %v750 = vsel %vm660, %v407, 0.0
    %v751 = vadd.f32 %v749, %v750
    %v752 = vsel %vm660, %v412, 0.0
    %v753 = vadd.f32 %v751, %v752
    %v754 = vsel %vm660, %v417, 0.0
    %v755 = vadd.f32 %v753, %v754
    %v756 = vsel %vm660, %v422, 0.0
    %v757 = vadd.f32 %v755, %v756
    %v758 = vsel %vm660, %v427, 0.0
    %v759 = vadd.f32 %v757, %v758
    %v760 = vsel %vm660, %v432, 0.0
    %v761 = vadd.f32 %v759, %v760
    %v762 = vsel %vm660, %v437, 0.0
    %v763 = vadd.f32 %v761, %v762
    %v764 = vsel %vm660, %v442, 0.0
    %v765 = vadd.f32 %v763, %v764
    %v766 = vsel %vm660, %v447, 0.0
    %v767 = vadd.f32 %v765, %v766
    %v768 = vsel %vm660, %v452, 0.0
    %v769 = vadd.f32 %v767, %v768
    %v770 = vsel %vm660, %v457, 0.0
    %v771 = vadd.f32 %v769, %v770
    %v772 = vsel %vm660, %v462, 0.0
    %v773 = vadd.f32 %v771, %v772
    %v774 = vsel %vm660, %v467, 0.0
    %v775 = vadd.f32 %v773, %v774
    %v776 = vsel %vm660, %v472, 0.0
    %v777 = vadd.f32 %v775, %v776
    %v778 = vsel %vm660, %v477, 0.0
    %v779 = vadd.f32 %v777, %v778
    %v780 = vsel %vm660, %v482, 0.0
    %v781 = vadd.f32 %v779, %v780
    %v782 = vsel %vm660, %v487, 0.0
    %v783 = vadd.f32 %v781, %v782
    %v784 = vsel %vm660, %v492, 0.0
    %v785 = vadd.f32 %v783, %v784
    %v786 = vsel %vm660, %v497, 0.0
    %v787 = vadd.f32 %v785, %v786
    %v788 = vsel %vm660, %v502, 0.0
    %v789 = vadd.f32 %v787, %v788
    %v790 = vsel %vm660, %v507, 0.0
    %v791 = vadd.f32 %v789, %v790
    %v792 = vsel %vm660, %v512, 0.0
    %v793 = vadd.f32 %v791, %v792
    %v794 = vsel %vm660, %v517, 0.0
    %v795 = vadd.f32 %v793, %v794
    %v796 = vsel %vm660, %v522, 0.0
    %v797 = vadd.f32 %v795, %v796
    %v798 = vsel %vm660, %v527, 0.0
    %v799 = vadd.f32 %v797, %v798
    %v800 = vsel %vm660, %v532, 0.0
    %v801 = vadd.f32 %v799, %v800
    %v802 = vsel %vm660, %v537, 0.0
    %v803 = vadd.f32 %v801, %v802
    %v804 = vsel %vm660, %v542, 0.0
    %v805 = vadd.f32 %v803, %v804
    %v806 = vsel %vm660, %v547, 0.0
    %v807 = vadd.f32 %v805, %v806
    %v808 = vsel %vm660, %v552, 0.0
    %v809 = vadd.f32 %v807, %v808
    %v810 = vsel %vm660, %v557, 0.0
    %v811 = vadd.f32 %v809, %v810
    %v812 = vsel %vm660, %v562, 0.0
    %v813 = vadd.f32 %v811, %v812
    %v814 = vsel %vm660, %v567, 0.0
    %v815 = vadd.f32 %v813, %v814
    %v816 = vsel %vm660, %v572, 0.0
    %v817 = vadd.f32 %v815, %v816
    %v818 = vsel %vm660, %v577, 0.0
    %v819 = vadd.f32 %v817, %v818
    %v820 = vsel %vm660, %v582, 0.0
    %v821 = vadd.f32 %v819, %v820
    %v822 = vsel %vm660, %v587, 0.0
    %v823 = vadd.f32 %v821, %v822
    %v824 = vsel %vm660, %v592, 0.0
    %v825 = vadd.f32 %v823, %v824
    %v826 = vsel %vm660, %v597, 0.0
    %v827 = vadd.f32 %v825, %v826
    %v828 = vsel %vm660, %v602, 0.0
    %v829 = vadd.f32 %v827, %v828
    %v830 = vsel %vm660, %v607, 0.0
    %v831 = vadd.f32 %v829, %v830
    %v832 = vsel %vm660, %v612, 0.0
    %v833 = vadd.f32 %v831, %v832
    %v834 = vsel %vm660, %v617, 0.0
    %v835 = vadd.f32 %v833, %v834
    %v836 = vsel %vm660, %v622, 0.0
    %v837 = vadd.f32 %v835, %v836
    %v838 = vsel %vm660, %v627, 0.0
    %v839 = vadd.f32 %v837, %v838
    %v840 = vsel %vm660, %v632, 0.0
    %v841 = vadd.f32 %v839, %v840
    %v842 = vsel %vm660, %v637, 0.0
    %v843 = vadd.f32 %v841, %v842
    %v844 = vsel %vm660, %v642, 0.0
    %v845 = vadd.f32 %v843, %v844
    %v846 = vsel %vm660, %v647, 0.0
    %v847 = vadd.f32 %v845, %v846
    %v848 = vsel %vm660, %v652, 0.0
    %v849 = vadd.f32 %v847, %v848
    %v850 = vsel %vm660, %v657, 0.0
    %v851 = vadd.f32 %v849, %v850
    %v852 = vrot.slane %v851, 4
    %v853 = vadd.f32 %v851, %v852
    %v854 = vrot.slane %v853, 2
    %v855 = vadd.f32 %v853, %v854
    %v856 = vrot.slane %v855, 1
    %v857 = vadd.f32 %v855, %v856
    %v858 = vmul.f32 %v342, %v342
    %v859 = vmul.f32 %v347, %v347
    %v860 = vmul.f32 %v352, %v352
    %v861 = vmul.f32 %v357, %v357
    %v862 = vmul.f32 %v362, %v362
    %v863 = vmul.f32 %v367, %v367
    %v864 = vmul.f32 %v372, %v372
    %v865 = vmul.f32 %v377, %v377
    %v866 = vmul.f32 %v382, %v382
    %v867 = vmul.f32 %v387, %v387
    %v868 = vmul.f32 %v392, %v392
    %v869 = vmul.f32 %v397, %v397
    %v870 = vmul.f32 %v402, %v402
    %v871 = vmul.f32 %v407, %v407
    %v872 = vmul.f32 %v412, %v412
    %v873 = vmul.f32 %v417, %v417
    %v874 = vmul.f32 %v422, %v422
    %v875 = vmul.f32 %v427, %v427
    %v876 = vmul.f32 %v432, %v432
    %v877 = vmul.f32 %v437, %v437
    %v878 = vmul.f32 %v442, %v442
    %v879 = vmul.f32 %v447, %v447
    %v880 = vmul.f32 %v452, %v452
    %v881 = vmul.f32 %v457, %v457
    %v882 = vmul.f32 %v462, %v462
    %v883 = vmul.f32 %v467, %v467
    %v884 = vmul.f32 %v472, %v472
    %v885 = vmul.f32 %v477, %v477
    %v886 = vmul.f32 %v482, %v482
    %v887 = vmul.f32 %v487, %v487
    %v888 = vmul.f32 %v492, %v492
    %v889 = vmul.f32 %v497, %v497
    %v890 = vmul.f32 %v502, %v502
    %v891 = vmul.f32 %v507, %v507
    %v892 = vmul.f32 %v512, %v512
    %v893 = vmul.f32 %v517, %v517
    %v894 = vmul.f32 %v522, %v522
    %v895 = vmul.f32 %v527, %v527
    %v896 = vmul.f32 %v532, %v532
    %v897 = vmul.f32 %v537, %v537
    %v898 = vmul.f32 %v542, %v542
    %v899 = vmul.f32 %v547, %v547
    %v900 = vmul.f32 %v552, %v552
    %v901 = vmul.f32 %v557, %v557
    %v902 = vmul.f32 %v562, %v562
    %v903 = vmul.f32 %v567, %v567
    %v904 = vmul.f32 %v572, %v572
    %v905 = vmul.f32 %v577, %v577
    %v906 = vmul.f32 %v582, %v582
    %v907 = vmul.f32 %v587, %v587
    %v908 = vmul.f32 %v592, %v592
    %v909 = vmul.f32 %v597, %v597
    %v910 = vmul.f32 %v602, %v602
    %v911 = vmul.f32 %v607, %v607
    %v912 = vmul.f32 %v612, %v612
    %v913 = vmul.f32 %v617, %v617
    %v914 = vmul.f32 %v622, %v622
    %v915 = vmul.f32 %v627, %v627
    %v916 = vmul.f32 %v632, %v632
    %v917 = vmul.f32 %v637, %v637
    %v918 = vmul.f32 %v642, %v642
    %v919 = vmul.f32 %v647, %v647
    %v920 = vmul.f32 %v652, %v652
    %v921 = vmul.f32 %v657, %v657
    %v922 = vsel %vm660, %v858, 0.0
    %v923 = vsel %vm660, %v859, 0.0
    %v924 = vadd.f32 %v922, %v923
    %v925 = vsel %vm660, %v860, 0.0
    %v926 = vadd.f32 %v924, %v925
    %v927 = vsel %vm660, %v861, 0.0
    %v928 = vadd.f32 %v926, %v927
    %v929 = vsel %vm660, %v862, 0.0
    %v930 = vadd.f32 %v928, %v929
    %v931 = vsel %vm660, %v863, 0.0
    %v932 = vadd.f32 %v930, %v931
    %v933 = vsel %vm660, %v864, 0.0
    %v934 = vadd.f32 %v932, %v933
    %v935 = vsel %vm660, %v865, 0.0
    %v936 = vadd.f32 %v934, %v935
    %v937 = vsel %vm660, %v866, 0.0
    %v938 = vadd.f32 %v936, %v937
    %v939 = vsel %vm660, %v867, 0.0
    %v940 = vadd.f32 %v938, %v939
    %v941 = vsel %vm660, %v868, 0.0
    %v942 = vadd.f32 %v940, %v941
    %v943 = vsel %vm660, %v869, 0.0
    %v944 = vadd.f32 %v942, %v943
    %v945 = vsel %vm660, %v870, 0.0
    %v946 = vadd.f32 %v944, %v945
    %v947 = vsel %vm660, %v871, 0.0
    %v948 = vadd.f32 %v946, %v947
    %v949 = vsel %vm660, %v872, 0.0
    %v950 = vadd.f32 %v948, %v949
    %v951 = vsel %vm660, %v873, 0.0
    %v952 = vadd.f32 %v950, %v951
    %v953 = vsel %vm660, %v874, 0.0
    %v954 = vadd.f32 %v952, %v953
    %v955 = vsel %vm660, %v875, 0.0
    %v956 = vadd.f32 %v954, %v955
    %v957 = vsel %vm660, %v876, 0.0
    %v958 = vadd.f32 %v956, %v957
    %v959 = vsel %vm660, %v877, 0.0
    %v960 = vadd.f32 %v958, %v959
    %v961 = vsel %vm660, %v878, 0.0
    %v962 = vadd.f32 %v960, %v961
    %v963 = vsel %vm660, %v879, 0.0
    %v964 = vadd.f32 %v962, %v963
    %v965 = vsel %vm660, %v880, 0.0
    %v966 = vadd.f32 %v964, %v965
    %v967 = vsel %vm660, %v881, 0.0
    %v968 = vadd.f32 %v966, %v967
    %v969 = vsel %vm660, %v882, 0.0
    %v970 = vadd.f32 %v968, %v969
    %v971 = vsel %vm660, %v883, 0.0
    %v972 = vadd.f32 %v970, %v971
    %v973 = vsel %vm660, %v884, 0.0
    %v974 = vadd.f32 %v972, %v973
    %v975 = vsel %vm660, %v885, 0.0
    %v976 = vadd.f32 %v974, %v975
    %v977 = vsel %vm660, %v886, 0.0
    %v978 = vadd.f32 %v976, %v977
    %v979 = vsel %vm660, %v887, 0.0
    %v980 = vadd.f32 %v978, %v979
    %v981 = vsel %vm660, %v888, 0.0
    %v982 = vadd.f32 %v980, %v981
    %v983 = vsel %vm660, %v889, 0.0
    %v984 = vadd.f32 %v982, %v983
    %v985 = vsel %vm660, %v890, 0.0
    %v986 = vadd.f32 %v984, %v985
    %v987 = vsel %vm660, %v891, 0.0
    %v988 = vadd.f32 %v986, %v987
    %v989 = vsel %vm660, %v892, 0.0
    %v990 = vadd.f32 %v988, %v989
    %v991 = vsel %vm660, %v893, 0.0
    %v992 = vadd.f32 %v990, %v991
    %v993 = vsel %vm660, %v894, 0.0
    %v994 = vadd.f32 %v992, %v993
    %v995 = vsel %vm660, %v895, 0.0
    %v996 = vadd.f32 %v994, %v995
    %v997 = vsel %vm660, %v896, 0.0
    %v998 = vadd.f32 %v996, %v997
    %v999 = vsel %vm660, %v897, 0.0
    %v1000 = vadd.f32 %v998, %v999
    %v1001 = vsel %vm660, %v898, 0.0
    %v1002 = vadd.f32 %v1000, %v1001
    %v1003 = vsel %vm660, %v899, 0.0
    %v1004 = vadd.f32 %v1002, %v1003
    %v1005 = vsel %vm660, %v900, 0.0
    %v1006 = vadd.f32 %v1004, %v1005
    %v1007 = vsel %vm660, %v901, 0.0
    %v1008 = vadd.f32 %v1006, %v1007
    %v1009 = vsel %vm660, %v902, 0.0
    %v1010 = vadd.f32 %v1008, %v1009
    %v1011 = vsel %vm660, %v903, 0.0
    %v1012 = vadd.f32 %v1010, %v1011
    %v1013 = vsel %vm660, %v904, 0.0
    %v1014 = vadd.f32 %v1012, %v1013
    %v1015 = vsel %vm660, %v905, 0.0
    %v1016 = vadd.f32 %v1014, %v1015
    %v1017 = vsel %vm660, %v906, 0.0
    %v1018 = vadd.f32 %v1016, %v1017
    %v1019 = vsel %vm660, %v907, 0.0
    %v1020 = vadd.f32 %v1018, %v1019
    %v1021 = vsel %vm660, %v908, 0.0
    %v1022 = vadd.f32 %v1020, %v1021
    %v1023 = vsel %vm660, %v909, 0.0
    %v1024 = vadd.f32 %v1022, %v1023
    %v1025 = vsel %vm660, %v910, 0.0
    %v1026 = vadd.f32 %v1024, %v1025
    %v1027 = vsel %vm660, %v911, 0.0
    %v1028 = vadd.f32 %v1026, %v1027
    %v1029 = vsel %vm660, %v912, 0.0
    %v1030 = vadd.f32 %v1028, %v1029
    %v1031 = vsel %vm660, %v913, 0.0
    %v1032 = vadd.f32 %v1030, %v1031
    %v1033 = vsel %vm660, %v914, 0.0
    %v1034 = vadd.f32 %v1032, %v1033
    %v1035 = vsel %vm660, %v915, 0.0
    %v1036 = vadd.f32 %v1034, %v1035
    %v1037 = vsel %vm660, %v916, 0.0
    %v1038 = vadd.f32 %v1036, %v1037
    %v1039 = vsel %vm660, %v917, 0.0
    %v1040 = vadd.f32 %v1038, %v1039
    %v1041 = vsel %vm660, %v918, 0.0
    %v1042 = vadd.f32 %v1040, %v1041
    %v1043 = vsel %vm660, %v919, 0.0
    %v1044 = vadd.f32 %v1042, %v1043
    %v1045 = vsel %vm660, %v920, 0.0
    %v1046 = vadd.f32 %v1044, %v1045
    %v1047 = vsel %vm660, %v921, 0.0
    %v1048 = vadd.f32 %v1046, %v1047
    %v1049 = vrot.slane %v1048, 4
    %v1050 = vadd.f32 %v1048, %v1049
    %v1051 = vrot.slane %v1050, 2
    %v1052 = vadd.f32 %v1050, %v1051
    %v1053 = vrot.slane %v1052, 1
    %v1054 = vadd.f32 %v1052, %v1053
    %vm1055 = vcmask 1040384
    %v1056 = vsel %vm1055, %v857, %v1054
    %vm1057 = vcmask 1041408
    %v1058 = vsel %vm1057, %v1056, 0.0
    %v1059 = vsel %vm660, %v1058, 0.0
    %1060 = vst [vmem:[#allocation2] sm:$0xff] %v1059
    // Predicated region
    $region10: #{tpu_custom_call.1} parent=1 // pred_check
      _
    $region11: #{tpu_custom_call.1} parent=1 // pred_check_branch
      %1062 = sbr.rel (0) target = $region13
    $region12: #{tpu_custom_call.1} parent=1 // pred_region
      _
    $region13: #{tpu_custom_call.1} parent=1 // pred_fallthru
      _
    // Predicated region
    $region14: #{tpu_custom_call.1} parent=1 // pred_check
      _
    $region15: #{tpu_custom_call.1} parent=1 // pred_check_branch
      %1064 = sbr.rel (0) target = $region17
    $region16: #{tpu_custom_call.1} parent=1 // pred_region
      %s1066 = ssub.s32 128, 128
      %1067 = vsyncadd [#allocation3], %s1066
      %s1069 = sshll.u32 [#allocation2], 4
      %s1070 = int_to_ptr.vmem [resolvable:$true] %s1069
      %1072 = dma.vmem_to_hbm [thread:$0]  %s1070, 128, %s3, [#allocation3]
    $region17: #{tpu_custom_call.1} parent=1 // pred_fallthru
      _
    // Predicated region
    $region18: #{tpu_custom_call.1} parent=1 // pred_check
      _
    $region19: #{tpu_custom_call.1} parent=1 // pred_check_branch
      %1074 = sbr.rel (0) target = $region21
    $region20: #{tpu_custom_call.1} parent=1 // pred_region
      _
    $region21: #{tpu_custom_call.1} parent=1 // pred_fallthru
      _
    // Predicated region
    $region22: #{tpu_custom_call.1} parent=1 // pred_check
      _
    $region23: #{tpu_custom_call.1} parent=1 // pred_check_branch
      %1076 = sbr.rel (0) target = $region25
    $region24: #{tpu_custom_call.1} parent=1 // pred_region
      %1077 = dma.done [#allocation3], 128
    $region25: #{tpu_custom_call.1} parent=1 // pred_fallthru
      _
    %1078 = vsyncpa [#allocation3], 1

</llo_original>
